<compile_context>
chip_gen: v6e
topology: v6e:2x2x1
jax: 0.10.0
libtpu: 0.0.40
codegen_flags: <defaults>
</compile_context>

<pallas_src>
import functools
import math

import jax
import jax.numpy as jnp
from jax import lax
from jax.experimental import pallas as pl
from jax.experimental.pallas import tpu as pltpu


def _round_up(x, m):
    return ((x + m - 1) // m) * m


def _vmem_budget():
    """(vmem_limit_bytes, target_block_bytes) chosen per TPU generation."""
    try:
        cap = int(getattr(pltpu.get_tpu_info(), "vmem_capacity_bytes", 64 << 20))
    except Exception:  # CPU tracing / older jax: conservative (v7x-safe) default
        cap = 64 << 20
    if cap >= 100 << 20:           # v5e / v6e: 128 MiB physical VMEM
        return 64 << 20, 4 << 20   # larger DMAs: these chips are HBM-bound here
    return 32 << 20, 2 << 20       # v7x: 64 MiB physical VMEM -> stay small


def _pick_rows_per_block(total_rows, quantum, target_rows, max_rows):
    """Block height: a multiple of `quantum`, near target_rows, preferring a
    divisor of total_rows (avoids the full-array pad copy).
    Returns (rows_per_block, pad_rows)."""
    target = max(quantum, min(target_rows, max_rows, total_rows))
    target = max(quantum, (target // quantum) * quantum)
    if total_rows % quantum == 0:
        r = target
        while r >= quantum:
            if total_rows % r == 0:
                return r, 0
            r -= quantum
    pad = (-total_rows) % target
    return target, pad


def _write_partials(out_ref, h_part, w_part):
    # Per-block partial sums: lane 0 = h_tv, lane 1 = w_tv (rest zero).
    lane = lax.broadcasted_iota(jnp.int32, (1, 1, 128), 2)
    out_ref[...] = jnp.where(lane == 0, h_part,
                             jnp.where(lane == 1, w_part, 0.0))


def _tv_kernel_flat(mask_ref, x_ref, out_ref, *, w):
    """Block of (rows, H*W); each row is one flattened image plane."""
    x = x_ref[...].astype(jnp.float32)                 # (rows, H*W)
    mh = mask_ref[0:1, :]                              # (1, H*W): 1.0 where k >= W
    mw = mask_ref[1:2, :]                              # (1, H*W): 1.0 where k % W != 0
    dh = x - pltpu.roll(x, w, 1)                       # vertical neighbour  (k - W)
    dw = x - pltpu.roll(x, 1, 1)                       # horizontal neighbour (k - 1)
    # TODO(synk): if profiling still shows VALU-slot saturation on v7x, push the
    # square+reduce onto the MXU via lax.dot_general (all-dims contraction) after
    # verifying with pl.lower_as_mlir that it lowers to vmatmul.
    h_part = jnp.sum(mh * (dh * dh))
    w_part = jnp.sum(mw * (dw * dw))
    _write_partials(out_ref, h_part, w_part)


def _tv_kernel_plane(x_ref, out_ref, *, h):
    """Block of (rows, W): whole image planes (rows % h == 0)."""
    x = x_ref[...].astype(jnp.float32)                 # (rows, W)
    rows, w = x.shape
    row = lax.broadcasted_iota(jnp.int32, (rows, 1), 0)
    col = lax.broadcasted_iota(jnp.int32, (1, w), 1)
    mh = (row % h != 0).astype(jnp.float32)            # first row of each plane invalid
    mw = (col != 0).astype(jnp.float32)                # first column invalid
    dh = x - pltpu.roll(x, 1, 0)                       # sublane roll: previous image row
    dw = x - pltpu.roll(x, 1, 1)                       # lane roll: previous column
    h_part = jnp.sum(mh * (dh * dh))
    w_part = jnp.sum(mw * (dw * dw))
    _write_partials(out_ref, h_part, w_part)


def tv_loss(x, tv_loss_weight=1.0):
    """x: (B, C, H, W) -> scalar, matching PyTorch TVLoss.forward exactly."""
    b, c, h, w = x.shape
    bc = b * c
    hw = h * w
    itemsize = jnp.dtype(x.dtype).itemsize

    vmem_limit, target_block_bytes = _vmem_budget()
    # Per-element working set: double-buffered input + ~5 f32 temporaries
    # (f32 cast, two roll results, diffs/squares).
    work_bytes_per_elem = 2 * itemsize + 5 * 4
    max_block_elems = max(1, int(0.6 * vmem_limit) // work_bytes_per_elem)

    # Plane layout when W is lane-aligned (cheaper masks, sublane roll instead
    # of a multi-vreg roll-by-W) or when even an 8-row flat block would not fit
    # the VMEM budget (large images on v7x).
    use_plane = (w % 128 == 0) or (8 * hw > max_block_elems)

    if use_plane:
        total_rows, width = bc * h, w
        quantum = (h * 8) // math.gcd(h, 8)        # lcm(h, 8): plane- & sublane-aligned
        kernel = functools.partial(_tv_kernel_plane, h=h)
    else:
        total_rows, width = bc, hw
        quantum = 8
        kernel = functools.partial(_tv_kernel_flat, w=w)

    target_rows = max(1, (target_block_bytes // itemsize) // width)
    # Keep >=4 blocks when the row count allows (pipelining + both v7x cores).
    target_rows = min(target_rows, _round_up(-(-total_rows // 4), quantum))
    max_rows = max(1, max_block_elems // width)
    rows_pb, pad = _pick_rows_per_block(total_rows, quantum, target_rows, max_rows)
    # TODO(synk): for planes so large that a single quantum-aligned block still
    # exceeds the VMEM budget (e.g. odd H with H*W*4 >> 16 MiB), tile W with a
    # one-column halo instead of growing the block.

    x2d = x.reshape(total_rows, width)             # contiguous -> free reshape
    if pad:
        # Only reached when no dividing block height exists; zero rows/planes
        # contribute nothing to either sum.
        x2d = jnp.pad(x2d, ((0, pad), (0, 0)))
    num_blocks = (total_rows + pad) // rows_pb

    x_idx = lambda i: (i, 0)
    x_spec = pl.BlockSpec((rows_pb, width), x_idx)
    if num_blocks >= 4 and rows_pb * width * itemsize <= (2 << 20):
        # Small blocks leave little compute to hide DMA issue latency: go 3-deep.
        try:
            x_spec = pl.BlockSpec((rows_pb, width), x_idx,
                                  pipeline_mode=pl.Buffered(3))
        except Exception:
            x_spec = pl.BlockSpec((rows_pb, width), x_idx)

    if use_plane:
        in_specs = [x_spec]
        args = (x2d,)
    else:
        # Precomputed 0/1 masks: row 0 = vertical validity (k >= W),
        # row 1 = horizontal validity (k % W != 0).  Constant index_map ->
        # DMA'd into VMEM once for the whole grid.
        k = jnp.arange(hw, dtype=jnp.int32)
        masks = jnp.stack([(k >= w).astype(jnp.float32),
                           (k % w != 0).astype(jnp.float32)])
        in_specs = [pl.BlockSpec((2, hw), lambda i: (0, 0)), x_spec]
        args = (masks, x2d)

    partials = pl.pallas_call(
        kernel,
        out_shape=jax.ShapeDtypeStruct((num_blocks, 1, 128), jnp.float32),
        grid_spec=pltpu.PrefetchScalarGridSpec(
            num_scalar_prefetch=0,
            grid=(num_blocks,),
            in_specs=in_specs,
            out_specs=pl.BlockSpec((1, 1, 128), lambda i: (i, 0, 0)),
        ),
        compiler_params=pltpu.CompilerParams(
            dimension_semantics=("parallel",),     # independent per-block partials
            vmem_limit_bytes=vmem_limit,
        ),
    )(*args)

    h_tv = jnp.sum(partials[:, 0, 0])
    w_tv = jnp.sum(partials[:, 0, 1])

    count_h = c * (h - 1) * w     # matches PyTorch (div-by-zero when h==1, as torch does)
    count_w = c * h * (w - 1)
    return tv_loss_weight * 2.0 * (h_tv / count_h + w_tv / count_w) / b


def _tv_loss_ref(x, tv_loss_weight=1.0):
    b, c, h, w = x.shape
    count_h = c * (h - 1) * w
    count_w = c * h * (w - 1)
    h_tv = jnp.sum((x[:, :, 1:, :] - x[:, :, : h - 1, :]) ** 2)
    w_tv = jnp.sum((x[:, :, :, 1:] - x[:, :, :, : w - 1]) ** 2)
    return tv_loss_weight * 2.0 * (h_tv / count_h + w_tv / count_w) / b


if __name__ == "__main__":
    key = jax.random.PRNGKey(0)
    k1, k2 = jax.random.split(key)

    # Flat-layout path (W not lane-aligned).
    x1 = jax.random.normal(k1, (2, 4, 16, 16), dtype=jnp.float32)
    out1 = jax.block_until_ready(tv_loss(x1, tv_loss_weight=1.0))
    ref1 = jax.block_until_ready(_tv_loss_ref(x1, tv_loss_weight=1.0))
    assert jnp.allclose(out1, ref1, rtol=1e-5, atol=1e-5), (out1, ref1)

    # Plane-layout path (W % 128 == 0, multi-block grid).
    x2 = jax.random.normal(k2, (2, 3, 8, 128), dtype=jnp.float32)
    out2 = jax.block_until_ready(tv_loss(x2, tv_loss_weight=0.5))
    ref2 = jax.block_until_ready(_tv_loss_ref(x2, tv_loss_weight=0.5))
    assert jnp.allclose(out2, ref2, rtol=1e-5, atol=1e-5), (out2, ref2)

    print("KERNEL_OK")
</pallas_src>

<mosaic_0001>
module attributes {stable_mosaic.version = 11 : i64} {
  func.func @_tv_kernel_flat(%arg0: i32, %arg1: memref<2x256xf32, #tpu.memory_space<vmem>>, %arg2: memref<8x256xf32, #tpu.memory_space<vmem>>, %arg3: memref<1x1x128xf32, #tpu.memory_space<vmem>>) attributes {dimension_semantics = [#tpu.dimension_semantics<parallel>], iteration_bounds = array<i64: 1>, scalar_prefetch = 0 : i64, scratch_operands = 0 : i64, tpu.core_type = #tpu.core_type<tc>, window_params = [{pipeline_mode = #tpu.pipeline_mode<synchronous>, transform_indices = @transform_0, window_bounds = array<i64: 2, 256>}, {transform_indices = @transform_1, window_bounds = array<i64: 8, 256>}, {transform_indices = @transform_2, window_bounds = array<i64: 1, 1, 128>}]} {
    %c0 = arith.constant 0 : index
    %c0_0 = arith.constant 0 : index
    %0 = vector.load %arg2[%c0, %c0_0] : memref<8x256xf32, #tpu.memory_space<vmem>>, vector<8x256xf32>
    %c0_1 = arith.constant 0 : index
    %c0_2 = arith.constant 0 : index
    %1 = vector.load %arg1[%c0_1, %c0_2] : memref<2x256xf32, #tpu.memory_space<vmem>>, vector<1x256xf32>
    %c1 = arith.constant 1 : index
    %c0_3 = arith.constant 0 : index
    %2 = vector.load %arg1[%c1, %c0_3] : memref<2x256xf32, #tpu.memory_space<vmem>>, vector<1x256xf32>
    %c16_i32 = arith.constant 16 : i32
    %3 = tpu.dynamic_rotate %0 by %c16_i32 dim 1 : vector<8x256xf32>, i32 -> vector<8x256xf32>
    %4 = arith.subf %0, %3 : vector<8x256xf32>
    %c1_i32 = arith.constant 1 : i32
    %5 = tpu.dynamic_rotate %0 by %c1_i32 dim 1 : vector<8x256xf32>, i32 -> vector<8x256xf32>
    %6 = arith.subf %0, %5 : vector<8x256xf32>
    %7 = arith.mulf %4, %4 : vector<8x256xf32>
    %8 = vector.broadcast %1 : vector<1x256xf32> to vector<8x256xf32>
    %9 = arith.mulf %8, %7 : vector<8x256xf32>
    %10 = vector.shape_cast %9 : vector<8x256xf32> to vector<1x8x256xf32>
    %cst = arith.constant dense<0.000000e+00> : vector<1xf32>
    %11 = vector.multi_reduction <add>, %10, %cst [1, 2] : vector<1x8x256xf32> to vector<1xf32>
    %12 = vector.shape_cast %11 : vector<1xf32> to vector<1x1x1xf32>
    %13 = vector.extract %12[0, 0, 0] : f32 from vector<1x1x1xf32>
    %14 = arith.mulf %6, %6 : vector<8x256xf32>
    %15 = vector.broadcast %2 : vector<1x256xf32> to vector<8x256xf32>
    %16 = arith.mulf %15, %14 : vector<8x256xf32>
    %17 = vector.shape_cast %16 : vector<8x256xf32> to vector<1x8x256xf32>
    %cst_4 = arith.constant dense<0.000000e+00> : vector<1xf32>
    %18 = vector.multi_reduction <add>, %17, %cst_4 [1, 2] : vector<1x8x256xf32> to vector<1xf32>
    %19 = vector.shape_cast %18 : vector<1xf32> to vector<1x1x1xf32>
    %20 = vector.extract %19[0, 0, 0] : f32 from vector<1x1x1xf32>
    %21 = tpu.iota {dimensions = array<i32: 2>} : vector<1x1x128xi32>
    %c0_i32 = arith.constant 0 : i32
    %22 = vector.broadcast %c0_i32 : i32 to vector<1x1x128xi32>
    %23 = arith.cmpi eq, %21, %22 : vector<1x1x128xi32>
    %c1_i32_5 = arith.constant 1 : i32
    %24 = vector.broadcast %c1_i32_5 : i32 to vector<1x1x128xi32>
    %25 = arith.cmpi eq, %21, %24 : vector<1x1x128xi32>
    %cst_6 = arith.constant 0.000000e+00 : f32
    %26 = vector.broadcast %20 : f32 to vector<1x1x128xf32>
    %27 = vector.broadcast %cst_6 : f32 to vector<1x1x128xf32>
    %28 = arith.select %25, %26, %27 : vector<1x1x128xi1>, vector<1x1x128xf32>
    %29 = vector.broadcast %13 : f32 to vector<1x1x128xf32>
    %30 = arith.select %23, %29, %28 : vector<1x1x128xi1>, vector<1x1x128xf32>
    %c0_7 = arith.constant 0 : index
    %c0_8 = arith.constant 0 : index
    %c0_9 = arith.constant 0 : index
    %31 = vector.load %arg3[%c0_7, %c0_8, %c0_9] : memref<1x1x128xf32, #tpu.memory_space<vmem>>, vector<1x1x128xf32>
    tpu.vector_store %arg3[%c0_7, %c0_8, %c0_9], %30 {strides = array<i32>} : memref<1x1x128xf32, #tpu.memory_space<vmem>>, vector<1x1x128xf32>,
    return
  }
  func.func @transform_0(%arg0: i32) -> (i32, i32) {
    %c0_i32 = arith.constant 0 : i32
    %c0_i32_0 = arith.constant 0 : i32
    %c0_i32_1 = arith.constant 0 : i32
    return %c0_i32, %c0_i32_0 : i32, i32
  }
  func.func @transform_1(%arg0: i32) -> (i32, i32) {
    %c0_i32 = arith.constant 0 : i32
    %c0_i32_0 = arith.constant 0 : i32
    return %arg0, %c0_i32 : i32, i32
  }
  func.func @transform_2(%arg0: i32) -> (i32, i32, i32) {
    %c0_i32 = arith.constant 0 : i32
    %c0_i32_0 = arith.constant 0 : i32
    %c0_i32_1 = arith.constant 0 : i32
    return %arg0, %c0_i32, %c0_i32_0 : i32, i32, i32
  }
}

</mosaic_0001>

<llo_original>
// kernel: tpu_custom_call.1
$region0: #{tpu_custom_call.1}
  #allocation0 [shape = 'u32[]', space=smem, size = 0x4, offset = 0x4, fixed_abs, tag = 'smem constant byte address 0x4 - core index']
  #allocation1 [shape = 'u32[144,128]{1,0:T(1,128)}', space=vmem, size = 0x12000, scoped, tag = 'internal scratch']
  %s0 = inlined_call_operand.hbm [shape: f32[2,256], index: 0, kind: input, shape index: {}]
  %s1 = inlined_call_operand.hbm [shape: f32[8,256], index: 1, kind: input, shape index: {}]
  %s2 = inlined_call_operand.hbm [shape: f32[1,1,128], index: 2, kind: output, shape index: {}]
  %s3 = sld [smem:[#allocation0]]
  $region26: #{tpu_custom_call.1} parent=0
    _
  %s5 = ssub.s32 1, %s3
  %s6 = scalar_select 0, %s5, %s3
  $region1: #{tpu_custom_call.1} parent=0
    #allocation2 [shape = 'u8[2048]{0}', space=vmem, size = 0x800, scoped, tag = 'input window, operand 0, single buffered']
    #allocation3 [shape = 's32[1]{0}', space=sflag, size = 0x4, scoped, tag = 'scoped memory for tpu_custom_call.1']
    #allocation4 [shape = 's32[1]{0}', space=sflag, size = 0x4, scoped, tag = 'scoped memory for tpu_custom_call.1']
    #allocation5 [shape = 'u8[8192]{0}', space=vmem, size = 0x2000, scoped, tag = 'input window, operand 1, single buffered']
    #allocation6 [shape = 's32[1]{0}', space=sflag, size = 0x4, scoped, tag = 'scoped memory for tpu_custom_call.1']
    #allocation7 [shape = 'u8[512]{0}', space=vmem, size = 0x400, scoped, tag = 'output window, operand 0, single buffered']
    %7 = vsyncpa [#allocation3], 0
    %8 = vsyncpa [#allocation6], 0
    %9 = vsyncpa [#allocation4], 0
    // Predicated region
    $region2: #{tpu_custom_call.1} parent=1 // pred_check
      _
    $region3: #{tpu_custom_call.1} parent=1 // pred_check_branch
      %11 = sbr.rel (0) target = $region5
    $region4: #{tpu_custom_call.1} parent=1 // pred_region
      %s13 = ssub.s32 64, 64
      %14 = vsyncadd [#allocation3], %s13
      %s16 = sshll.u32 [#allocation2], 4
      %s17 = int_to_ptr.vmem [resolvable:$true] %s16
      %19 = dma.hbm_to_vmem [thread:$0]  %s0, 64, %s17, [#allocation3]
    $region5: #{tpu_custom_call.1} parent=1 // pred_fallthru
      _
    // Predicated region
    $region6: #{tpu_custom_call.1} parent=1 // pred_check
      _
    $region7: #{tpu_custom_call.1} parent=1 // pred_check_branch
      %21 = sbr.rel (0) target = $region9
    $region8: #{tpu_custom_call.1} parent=1 // pred_region
      %s23 = ssub.s32 256, 256
      %24 = vsyncadd [#allocation6], %s23
      %s26 = sshll.u32 [#allocation5], 4
      %s27 = int_to_ptr.vmem [resolvable:$true] %s26
      %29 = dma.hbm_to_vmem [thread:$0]  %s1, 256, %s27, [#allocation6]
    $region9: #{tpu_custom_call.1} parent=1 // pred_fallthru
      _
    // Predicated region
    $region10: #{tpu_custom_call.1} parent=1 // pred_check
      _
    $region11: #{tpu_custom_call.1} parent=1 // pred_check_branch
      %31 = sbr.rel (0) target = $region13
    $region12: #{tpu_custom_call.1} parent=1 // pred_region
      %32 = dma.done [#allocation3], 64
    $region13: #{tpu_custom_call.1} parent=1 // pred_fallthru
      _
    // Predicated region
    $region14: #{tpu_custom_call.1} parent=1 // pred_check
      _
    $region15: #{tpu_custom_call.1} parent=1 // pred_check_branch
      %34 = sbr.rel (0) target = $region17
    $region16: #{tpu_custom_call.1} parent=1 // pred_region
      %35 = dma.done [#allocation6], 256
    $region17: #{tpu_custom_call.1} parent=1 // pred_fallthru
      _
    %v36 = vld [vmem:[#allocation5] sm:$0xff]
    %v37 = vld [vmem:[#allocation5 + $0x8] sm:$0xff]
    %v38 = vld [vmem:[#allocation2] ss:$2 sm:$0x3]
    %s39 = scalar_lea.vmem [#allocation2], 1
    %v40 = vld [vmem:[%s39] ss:$2 sm:$0x3]
    %41 = vrot.lane.b32.xlu0 %v36, 16
    %v42 = vpop.permute.xlu0 %41
    %43 = vrot.lane.b32.xlu0 %v37, 16
    %v44 = vpop.permute.xlu0 %43
    %v45 = vlaneseq
    %v46 = vand.u32 %v45, 127
    %vm47 = vcmp.lt.s32.totalorder %v46, 16
    %v48 = vsel %vm47, %v42, %v44
    %v49 = vsel %vm47, %v44, %v42
    %v50 = vsub.f32 %v36, %v49
    %v51 = vsub.f32 %v37, %v48
    %52 = vrot.lane.b32.xlu0 %v36, 1
    %v53 = vpop.permute.xlu0 %52
    %54 = vrot.lane.b32.xlu0 %v37, 1
    %v55 = vpop.permute.xlu0 %54
    %vm56 = vcmp.lt.s32.totalorder %v46, 1
    %v57 = vsel %vm56, %v53, %v55
    %v58 = vsel %vm56, %v55, %v53
    %v59 = vsub.f32 %v36, %v58
    %v60 = vsub.f32 %v37, %v57
    %v61 = vmul.f32 %v50, %v50
    %v62 = vmul.f32 %v51, %v51
    %v64 = vlaneseq
    %v65 = vshrl.u32 %v64, 7
    %v66 = vsub.s32 0, %v65
    %v67 = vrot.slane %v38, %v66
    %v68 = vlaneseq
    %v69 = vshrl.u32 %v68, 7
    %v70 = vsub.s32 1, %v69
    %v71 = vrot.slane %v38, %v70
    %v74 = vmul.f32 %v67, %v61
    %v75 = vmul.f32 %v71, %v62
    %v76 = vadd.f32 %v74, %v75
    %77 = vadd.xlane.f32.xlu0 %v76
    %v78 = vpop.xlane.xlu0 %77
    %v79 = vrot.slane %v78, 4
    %v80 = vadd.f32 %v78, %v79
    %v81 = vrot.slane %v80, 2
    %v82 = vadd.f32 %v80, %v81
    %v83 = vrot.slane %v82, 1
    %v84 = vadd.f32 %v82, %v83
    %s85 = vtos %v84
    %v86 = vmul.f32 %v59, %v59
    %v87 = vmul.f32 %v60, %v60
    %v89 = vlaneseq
    %v90 = vshrl.u32 %v89, 7
    %v91 = vsub.s32 0, %v90
    %v92 = vrot.slane %v40, %v91
    %v93 = vlaneseq
    %v94 = vshrl.u32 %v93, 7
    %v95 = vsub.s32 1, %v94
    %v96 = vrot.slane %v40, %v95
    %v99 = vmul.f32 %v92, %v86
    %v100 = vmul.f32 %v96, %v87
    %v101 = vadd.f32 %v99, %v100
    %102 = vadd.xlane.f32.xlu0 %v101
    %v103 = vpop.xlane.xlu0 %102
    %v104 = vrot.slane %v103, 4
    %v105 = vadd.f32 %v103, %v104
    %v106 = vrot.slane %v105, 2
    %v107 = vadd.f32 %v105, %v106
    %v108 = vrot.slane %v107, 1
    %v109 = vadd.f32 %v107, %v108
    %s110 = vtos %v109
    %vm111 = vcmp.eq.s32.totalorder %v46, 0
    %vm112 = vcmp.eq.s32.totalorder %v46, 1
    %v113 = vstv %s110
    %v114 = vsel %vm112, %v113, 0.0
    %v115 = vstv %s85
    %v116 = vsel %vm111, %v115, %v114
    %117 = vst [vmem:[#allocation7] sm:$0x1] %v116
    // Predicated region
    $region18: #{tpu_custom_call.1} parent=1 // pred_check
      _
    $region19: #{tpu_custom_call.1} parent=1 // pred_check_branch
      %119 = sbr.rel (0) target = $region21
    $region20: #{tpu_custom_call.1} parent=1 // pred_region
      %s121 = ssub.s32 16, 16
      %122 = vsyncadd [#allocation4], %s121
      %s124 = sshll.u32 [#allocation7], 4
      %s125 = int_to_ptr.vmem [resolvable:$true] %s124
      %127 = dma.vmem_to_hbm [thread:$0]  %s125, 16, %s2, [#allocation4]
    $region21: #{tpu_custom_call.1} parent=1 // pred_fallthru
      _
    // Predicated region
    $region22: #{tpu_custom_call.1} parent=1 // pred_check
      _
    $region23: #{tpu_custom_call.1} parent=1 // pred_check_branch
      %129 = sbr.rel (0) target = $region25
    $region24: #{tpu_custom_call.1} parent=1 // pred_region
      %130 = dma.done [#allocation4], 16
    $region25: #{tpu_custom_call.1} parent=1 // pred_fallthru
      _
    %131 = vsyncpa [#allocation3], 1
    %132 = vsyncpa [#allocation6], 1
    %133 = vsyncpa [#allocation4], 1

</llo_original>
